<compile_context>
chip_gen: v7x
topology: tpu7x:2x2x1
jax: 0.10.0
libtpu: 0.0.40
codegen_flags: <defaults>
</compile_context>

<pallas_src>
import functools

import jax
import jax.numpy as jnp
from jax import lax
from jax.experimental import pallas as pl
from jax.experimental.pallas import tpu as pltpu


# ----------------------------------------------------------------- gate math --

def _gate_small_c(mean3, w3, b3, c_in):
    """Gate in sublane space: channels on sublanes, lane dim == 1.

    mean3: (B, C, 1) f32, w3: (Cin, Cout, 1), b3: (1, Cout, 1).
    Returns sigmoid(conv1x1_bn(mean)) + 1 as (B, Cout, 1) f32 (VPU only).
    """
    y = b3
    for ci in range(c_in):
        y = y + mean3[:, ci:ci + 1, :] * w3[ci:ci + 1, :, :]
    return 1.0 / (1.0 + jnp.exp(-y)) + 1.0


def _gate_large_c(mean2, w2, b2):
    """Gate via one tiny MXU matmul. mean2: (B, C), w2: (C, C), b2: (1, C)."""
    y = jnp.dot(mean2, w2, preferred_element_type=jnp.float32) + b2
    return 1.0 / (1.0 + jnp.exp(-y)) + 1.0


# ------------------------------------------------------------------- kernels --

def _fused_arm_kernel(x_ref, w_ref, b_ref, o_ref, *, inv_hw, c_in, small_c):
    """Single-pass: x resident in VMEM; mean -> gate -> apply."""
    xs = x_ref[...].astype(jnp.float32)                           # (N, C, HW)
    if small_c:
        mean = jnp.sum(xs, axis=2, keepdims=True) * inv_hw        # (N, C, 1)
        gate = _gate_small_c(mean, w_ref[...], b_ref[...], c_in)  # (N, C, 1)
    else:
        mean = jnp.sum(xs, axis=2) * inv_hw                       # (N, C)
        gate = _gate_large_c(mean, w_ref[...], b_ref[...])[:, :, None]
    o_ref[...] = (xs * gate).astype(o_ref.dtype)


def _pool_gate_kernel(x_ref, w_ref, b_ref, o_ref, acc_ref, *,
                      inv_hw, c_in, small_c, hw, th, needs_mask):
    """Pass 1 (tiled): spatial-sum reduction + fused conv/sigmoid finalize."""
    t = pl.program_id(1)

    @pl.when(t == 0)
    def _():
        acc_ref[...] = jnp.zeros_like(acc_ref)

    xs = x_ref[...].astype(jnp.float32)                           # (1, C, th)
    if needs_mask:
        lane = lax.broadcasted_iota(jnp.int32, xs.shape, 2)
        xs = jnp.where(lane < (hw - t * th), xs, 0.0)
    if small_c:
        acc_ref[...] += jnp.sum(xs, axis=2, keepdims=True)        # (1, C, 1)
    else:
        acc_ref[...] += jnp.sum(xs, axis=2)                       # (1, C)

    @pl.when(t == pl.num_programs(1) - 1)
    def _():
        mean = acc_ref[...] * inv_hw
        if small_c:
            o_ref[...] = _gate_small_c(mean, w_ref[...], b_ref[...],
                                       c_in).astype(o_ref.dtype)  # (1, C, 1)
        else:
            o_ref[0] = _gate_large_c(mean, w_ref[...],
                                     b_ref[...]).astype(o_ref.dtype)  # (1, C)


def _apply_gate_kernel(x_ref, g_ref, o_ref):
    """Pass 2 (tiled): out = x * gate, lane-broadcast multiply on (R, tb)."""
    o_ref[...] = (x_ref[...] * g_ref[...]).astype(o_ref.dtype)


# ------------------------------------------------------------------- helpers --

def _vmem_limit_bytes():
    cap = 64 << 20                      # conservative fallback (v7x physical)
    try:
        cap = int(pltpu.get_tpu_info().vmem_capacity_bytes)
    except Exception:
        pass
    return int(min(cap * 3 // 4, 112 << 20))


def _pick_lane_tile(hw, row_bytes, budget_bytes):
    """Multiple-of-128 lane tile so one block is ~budget_bytes; full extent if
    the whole row fits (full-dim blocks are always legal)."""
    budget_lanes = max(128, (budget_bytes // max(row_bytes, 1)) // 128 * 128)
    if budget_lanes >= hw:
        return hw
    return int(budget_lanes)


# ------------------------------------------------------------------- forward --

def arm_forward(x_nchw, params, *, force_two_pass=False, block_budget_bytes=None):
    n, c, h, w = x_nchw.shape
    hw = h * w
    dtype = x_nchw.dtype
    itemsize = jnp.dtype(dtype).itemsize
    inv_hw = 1.0 / float(hw)
    small_c = c <= 64

    vmem_limit = _vmem_limit_bytes()
    block_budget = block_budget_bytes or min(4 << 20, vmem_limit // 12)

    if small_c:
        w_arg = params["w_folded"].reshape(c, c, 1)
        b_arg = params["bias"].reshape(1, c, 1)
        w_dims, b_dims = (c, c, 1), (1, c, 1)
    else:
        w_arg = params["w_folded"]
        b_arg = params["bias"].reshape(1, c)
        w_dims, b_dims = (c, c), (1, c)
    w_idx0 = (0,) * len(w_dims)
    b_idx0 = (0,) * len(b_dims)

    x3 = x_nchw.reshape(n, c, hw)
    x_bytes = n * c * hw * itemsize

    # ---------------- fast path: whole x VMEM-resident, one fused pass ------
    if (not force_two_pass) and (4 * x_bytes + (2 << 20) <= vmem_limit):
        out = pl.pallas_call(
            functools.partial(_fused_arm_kernel, inv_hw=inv_hw, c_in=c,
                              small_c=small_c),
            out_shape=jax.ShapeDtypeStruct((n, c, hw), dtype),
            grid=(1,),
            in_specs=[pl.BlockSpec((n, c, hw), lambda i: (0, 0, 0)),
                      pl.BlockSpec(w_dims, lambda i: w_idx0),
                      pl.BlockSpec(b_dims, lambda i: b_idx0)],
            out_specs=pl.BlockSpec((n, c, hw), lambda i: (0, 0, 0)),
            compiler_params=pltpu.CompilerParams(
                dimension_semantics=("arbitrary",),
                vmem_limit_bytes=vmem_limit),
            cost_estimate=pl.CostEstimate(
                flops=2 * n * c * hw + 2 * n * c * c,
                transcendentals=n * c,
                bytes_accessed=2 * x_bytes + (c * c + 2 * c) * 4),
        )(x3, w_arg, b_arg)
        return out.reshape(n, c, h, w)

    # ---------------- pass 1: spatial mean -> 1x1 conv (BN folded) -> gate --
    th = _pick_lane_tile(hw, c * itemsize, block_budget)
    n_sp = int(pl.cdiv(hw, th))
    needs_mask = (hw % th) != 0

    if small_c:
        gate_shape = jax.ShapeDtypeStruct((n, c, 1), jnp.float32)
        gate_spec = pl.BlockSpec((1, c, 1), lambda b, t: (b, 0, 0))
        acc_alloc = pltpu.VMEM((1, c, 1), jnp.float32)
    else:
        gate_shape = jax.ShapeDtypeStruct((n, 1, c), jnp.float32)
        gate_spec = pl.BlockSpec((1, 1, c), lambda b, t: (b, 0, 0))
        acc_alloc = pltpu.VMEM((1, c), jnp.float32)

    gate = pl.pallas_call(
        functools.partial(_pool_gate_kernel, inv_hw=inv_hw, c_in=c,
                          small_c=small_c, hw=hw, th=th, needs_mask=needs_mask),
        out_shape=gate_shape,
        grid=(n, n_sp),
        in_specs=[pl.BlockSpec((1, c, th), lambda b, t: (b, 0, t)),
                  pl.BlockSpec(w_dims, lambda b, t: w_idx0),
                  pl.BlockSpec(b_dims, lambda b, t: b_idx0)],
        out_specs=gate_spec,
        scratch_shapes=[acc_alloc],
        compiler_params=pltpu.CompilerParams(
            dimension_semantics=("parallel", "arbitrary"),
            vmem_limit_bytes=vmem_limit),
        cost_estimate=pl.CostEstimate(
            flops=n * c * hw + 2 * n * c * c,
            transcendentals=n * c,
            bytes_accessed=x_bytes + (c * c + 2 * c + n * c) * 4),
    )(x3, w_arg, b_arg)

    # ---------------- pass 2: out = x * gate  (sublane-packed, lane-dense) --
    x2 = x_nchw.reshape(n * c, hw)
    gate2 = gate.reshape(n * c, 1)
    tb = _pick_lane_tile(hw, n * c * itemsize, block_budget)
    out = pl.pallas_call(
        _apply_gate_kernel,
        out_shape=jax.ShapeDtypeStruct((n * c, hw), dtype),
        grid=(int(pl.cdiv(hw, tb)),),
        in_specs=[pl.BlockSpec((n * c, tb), lambda t: (0, t)),
                  pl.BlockSpec((n * c, 1), lambda t: (0, 0))],
        out_specs=pl.BlockSpec((n * c, tb), lambda t: (0, t)),
        compiler_params=pltpu.CompilerParams(
            dimension_semantics=("parallel",),
            vmem_limit_bytes=vmem_limit),
        cost_estimate=pl.CostEstimate(
            flops=n * c * hw, transcendentals=0,
            bytes_accessed=2 * x_bytes + n * c * 4),
    )(x2, gate2)
    return out.reshape(n, c, h, w)


# -------------------------------------------------------------------- params --

def make_arm_params(key, chans):
    """Conv2d(chans, chans, 1, bias=False) + BatchNorm2d(chans), eval-folded."""
    kw_, kg, kb = jax.random.split(key, 3)
    w = jax.random.normal(kw_, (chans, chans), jnp.float32) * (1.0 / chans) ** 0.5
    gamma = 1.0 + 0.1 * jax.random.normal(kg, (chans,), jnp.float32)
    beta = 0.1 * jax.random.normal(kb, (chans,), jnp.float32)
    running_mean = jnp.zeros((chans,), jnp.float32)
    running_var = jnp.ones((chans,), jnp.float32)
    eps = 1e-5
    scale = gamma / jnp.sqrt(running_var + eps)
    bias = beta - running_mean * scale
    # TODO(synk): training-mode BatchNorm (batch statistics over the pooled
    # (N,C,1,1) tensor + running-stat updates) is not implemented; eval fold only.
    w_folded = w.T * scale[None, :]          # (Cin, Cout), BN scale folded in
    return dict(w=w, scale=scale, bias=bias, w_folded=w_folded)


# ------------------------------------------------------ pure-JAX reference ----

def arm_reference(x_nchw, params):
    m = jnp.mean(x_nchw, axis=(2, 3), keepdims=True)                  # (N,C,1,1)
    y = jnp.einsum("oc,ncij->noij", params["w"], m)                   # 1x1 conv
    y = (y * params["scale"][None, :, None, None]
         + params["bias"][None, :, None, None])
    attn = jax.nn.sigmoid(y)
    return x_nchw * attn + x_nchw


# ----------------------------------------------------------------------- main --

if __name__ == "__main__":
    keys = jax.random.split(jax.random.PRNGKey(0), 10)

    def check(x, params, **kw):
        out = jax.block_until_ready(arm_forward(x, params, **kw))
        assert out.shape == x.shape, out.shape
        ref = arm_reference(x, params)
        err = float(jnp.max(jnp.abs(out - ref)))
        assert jnp.allclose(out, ref, atol=2e-5, rtol=2e-5), err

    # 1) module-scale shapes (batch=2, channels=4, 16x16): fused fast path.
    check(jax.random.normal(keys[1], (2, 4, 16, 16), jnp.float32),
          make_arm_params(keys[0], 4))

    # 2) fused fast path, more channels / larger spatial extent.
    check(jax.random.normal(keys[3], (1, 8, 32, 32), jnp.float32),
          make_arm_params(keys[2], 8))

    # 3) fused fast path, large-C branch (MXU gate).
    check(jax.random.normal(keys[5], (1, 128, 16, 16), jnp.float32),
          make_arm_params(keys[4], 128))

    # 4) two-pass tiled path, H*W not a multiple of 128 (masked partial tiles).
    check(jax.random.normal(keys[7], (2, 8, 20, 20), jnp.float32),
          make_arm_params(keys[6], 8),
          force_two_pass=True, block_budget_bytes=8192)

    # 5) two-pass tiled path, large-C branch.
    check(jax.random.normal(keys[9], (1, 96, 20, 20), jnp.float32),
          make_arm_params(keys[8], 96),
          force_two_pass=True, block_budget_bytes=8192)

    print("KERNEL_OK")
</pallas_src>

<mosaic_0001>
module attributes {stable_mosaic.version = 11 : i64} {
  func.func @_fused_arm_kernel(%arg0: i32, %arg1: memref<2x4x256xf32, #tpu.memory_space<vmem>>, %arg2: memref<4x4x1xf32, #tpu.memory_space<vmem>>, %arg3: memref<1x4x1xf32, #tpu.memory_space<vmem>>, %arg4: memref<2x4x256xf32, #tpu.memory_space<vmem>>) attributes {dimension_semantics = [#tpu.dimension_semantics<arbitrary>], iteration_bounds = array<i64: 1>, scalar_prefetch = 0 : i64, scratch_operands = 0 : i64, tpu.core_type = #tpu.core_type<tc>, window_params = [{pipeline_mode = #tpu.pipeline_mode<synchronous>, transform_indices = @transform_0, window_bounds = array<i64: 2, 4, 256>}, {pipeline_mode = #tpu.pipeline_mode<synchronous>, transform_indices = @transform_1, window_bounds = array<i64: 4, 4, 1>}, {pipeline_mode = #tpu.pipeline_mode<synchronous>, transform_indices = @transform_2, window_bounds = array<i64: 1, 4, 1>}, {pipeline_mode = #tpu.pipeline_mode<synchronous>, transform_indices = @transform_3, window_bounds = array<i64: 2, 4, 256>}]} {
    %c0 = arith.constant 0 : index
    %c0_0 = arith.constant 0 : index
    %c0_1 = arith.constant 0 : index
    %0 = vector.load %arg1[%c0, %c0_0, %c0_1] : memref<2x4x256xf32, #tpu.memory_space<vmem>>, vector<2x4x256xf32>
    %cst = arith.constant dense<0.000000e+00> : vector<2x4xf32>
    %1 = vector.multi_reduction <add>, %0, %cst [2] : vector<2x4x256xf32> to vector<2x4xf32>
    %2 = vector.shape_cast %1 : vector<2x4xf32> to vector<2x4x1xf32>
    %cst_2 = arith.constant 3.906250e-03 : f32
    %3 = vector.broadcast %cst_2 : f32 to vector<2x4x1xf32>
    %4 = arith.mulf %2, %3 : vector<2x4x1xf32>
    %c0_3 = arith.constant 0 : index
    %c0_4 = arith.constant 0 : index
    %c0_5 = arith.constant 0 : index
    %5 = vector.load %arg2[%c0_3, %c0_4, %c0_5] : memref<4x4x1xf32, #tpu.memory_space<vmem>>, vector<4x4x1xf32>
    %c0_6 = arith.constant 0 : index
    %c0_7 = arith.constant 0 : index
    %c0_8 = arith.constant 0 : index
    %6 = vector.load %arg3[%c0_6, %c0_7, %c0_8] : memref<1x4x1xf32, #tpu.memory_space<vmem>>, vector<1x4x1xf32>
    %7 = vector.extract_strided_slice %4 {offsets = [0, 0, 0], sizes = [2, 1, 1], strides = [1, 1, 1]} : vector<2x4x1xf32> to vector<2x1x1xf32>
    %8 = vector.extract_strided_slice %5 {offsets = [0, 0, 0], sizes = [1, 4, 1], strides = [1, 1, 1]} : vector<4x4x1xf32> to vector<1x4x1xf32>
    %9 = vector.broadcast %7 : vector<2x1x1xf32> to vector<2x4x1xf32>
    %10 = vector.broadcast %8 : vector<1x4x1xf32> to vector<2x4x1xf32>
    %11 = arith.mulf %9, %10 : vector<2x4x1xf32>
    %12 = vector.broadcast %6 : vector<1x4x1xf32> to vector<2x4x1xf32>
    %13 = arith.addf %12, %11 : vector<2x4x1xf32>
    %14 = vector.extract_strided_slice %4 {offsets = [0, 1, 0], sizes = [2, 1, 1], strides = [1, 1, 1]} : vector<2x4x1xf32> to vector<2x1x1xf32>
    %15 = vector.extract_strided_slice %5 {offsets = [1, 0, 0], sizes = [1, 4, 1], strides = [1, 1, 1]} : vector<4x4x1xf32> to vector<1x4x1xf32>
    %16 = vector.broadcast %14 : vector<2x1x1xf32> to vector<2x4x1xf32>
    %17 = vector.broadcast %15 : vector<1x4x1xf32> to vector<2x4x1xf32>
    %18 = arith.mulf %16, %17 : vector<2x4x1xf32>
    %19 = arith.addf %13, %18 : vector<2x4x1xf32>
    %20 = vector.extract_strided_slice %4 {offsets = [0, 2, 0], sizes = [2, 1, 1], strides = [1, 1, 1]} : vector<2x4x1xf32> to vector<2x1x1xf32>
    %21 = vector.extract_strided_slice %5 {offsets = [2, 0, 0], sizes = [1, 4, 1], strides = [1, 1, 1]} : vector<4x4x1xf32> to vector<1x4x1xf32>
    %22 = vector.broadcast %20 : vector<2x1x1xf32> to vector<2x4x1xf32>
    %23 = vector.broadcast %21 : vector<1x4x1xf32> to vector<2x4x1xf32>
    %24 = arith.mulf %22, %23 : vector<2x4x1xf32>
    %25 = arith.addf %19, %24 : vector<2x4x1xf32>
    %26 = vector.extract_strided_slice %4 {offsets = [0, 3, 0], sizes = [2, 1, 1], strides = [1, 1, 1]} : vector<2x4x1xf32> to vector<2x1x1xf32>
    %27 = vector.extract_strided_slice %5 {offsets = [3, 0, 0], sizes = [1, 4, 1], strides = [1, 1, 1]} : vector<4x4x1xf32> to vector<1x4x1xf32>
    %28 = vector.broadcast %26 : vector<2x1x1xf32> to vector<2x4x1xf32>
    %29 = vector.broadcast %27 : vector<1x4x1xf32> to vector<2x4x1xf32>
    %30 = arith.mulf %28, %29 : vector<2x4x1xf32>
    %31 = arith.addf %25, %30 : vector<2x4x1xf32>
    %cst_9 = arith.constant 0.000000e+00 : f32
    %32 = vector.broadcast %cst_9 : f32 to vector<2x4x1xf32>
    %33 = arith.subf %32, %31 : vector<2x4x1xf32>
    %34 = math.exp %33 : vector<2x4x1xf32>
    %cst_10 = arith.constant 1.000000e+00 : f32
    %35 = vector.broadcast %cst_10 : f32 to vector<2x4x1xf32>
    %36 = arith.addf %35, %34 : vector<2x4x1xf32>
    %cst_11 = arith.constant 1.000000e+00 : f32
    %37 = vector.broadcast %cst_11 : f32 to vector<2x4x1xf32>
    %38 = arith.divf %37, %36 : vector<2x4x1xf32>
    %cst_12 = arith.constant 1.000000e+00 : f32
    %39 = vector.broadcast %cst_12 : f32 to vector<2x4x1xf32>
    %40 = arith.addf %38, %39 : vector<2x4x1xf32>
    %41 = vector.broadcast %40 : vector<2x4x1xf32> to vector<2x4x256xf32>
    %42 = arith.mulf %0, %41 : vector<2x4x256xf32>
    %c0_13 = arith.constant 0 : index
    %c0_14 = arith.constant 0 : index
    %c0_15 = arith.constant 0 : index
    %43 = vector.load %arg4[%c0_13, %c0_14, %c0_15] : memref<2x4x256xf32, #tpu.memory_space<vmem>>, vector<2x4x256xf32>
    tpu.vector_store %arg4[%c0_13, %c0_14, %c0_15], %42 {strides = array<i32>} : memref<2x4x256xf32, #tpu.memory_space<vmem>>, vector<2x4x256xf32>,
    return
  }
  func.func @transform_0(%arg0: i32) -> (i32, i32, i32) {
    %c0_i32 = arith.constant 0 : i32
    %c0_i32_0 = arith.constant 0 : i32
    %c0_i32_1 = arith.constant 0 : i32
    %c0_i32_2 = arith.constant 0 : i32
    return %c0_i32, %c0_i32_0, %c0_i32_1 : i32, i32, i32
  }
  func.func @transform_1(%arg0: i32) -> (i32, i32, i32) {
    %c0_i32 = arith.constant 0 : i32
    %c0_i32_0 = arith.constant 0 : i32
    %c0_i32_1 = arith.constant 0 : i32
    %c0_i32_2 = arith.constant 0 : i32
    return %c0_i32, %c0_i32_0, %c0_i32_1 : i32, i32, i32
  }
  func.func @transform_2(%arg0: i32) -> (i32, i32, i32) {
    %c0_i32 = arith.constant 0 : i32
    %c0_i32_0 = arith.constant 0 : i32
    %c0_i32_1 = arith.constant 0 : i32
    %c0_i32_2 = arith.constant 0 : i32
    return %c0_i32, %c0_i32_0, %c0_i32_1 : i32, i32, i32
  }
  func.func @transform_3(%arg0: i32) -> (i32, i32, i32) {
    %c0_i32 = arith.constant 0 : i32
    %c0_i32_0 = arith.constant 0 : i32
    %c0_i32_1 = arith.constant 0 : i32
    %c0_i32_2 = arith.constant 0 : i32
    return %c0_i32, %c0_i32_0, %c0_i32_1 : i32, i32, i32
  }
}

</mosaic_0001>

<llo_original>
// kernel: tpu_custom_call.1
$region0: #{tpu_custom_call.1}
  #allocation0 [shape = 'u32[]', space=smem, size = 0x4, offset = 0x4, fixed_abs, tag = 'smem constant byte address 0x4 - core index']
  #allocation1 [shape = 'u32[144,128]{1,0:T(1,128)}', space=vmem, size = 0x12000, scoped, tag = 'internal scratch']
  %s0 = inlined_call_operand.vmem [shape: f32[2,4,256], index: 0, kind: input, shape index: {}]
  %s1 = inlined_call_operand.vmem [shape: f32[4,4,1], index: 1, kind: input, shape index: {}]
  %s2 = inlined_call_operand.vmem [shape: f32[1,4,1], index: 2, kind: input, shape index: {}]
  %s3 = inlined_call_operand.hbm [shape: f32[2,4,256], index: 3, kind: output, shape index: {}]
  %s4 = sld [smem:[#allocation0]]
  $region22: #{tpu_custom_call.1} parent=0
    _
  %s6 = ssub.s32 1, %s4
  %s7 = scalar_select 0, %s6, %s4
  $region1: #{tpu_custom_call.1} parent=0
    #allocation2 [shape = 'u8[8192]{0}', space=vmem, size = 0x2000, scoped, tag = 'output window, operand 0, single buffered']
    #allocation3 [shape = 's32[1]{0}', space=sflag, size = 0x4, scoped, tag = 'scoped memory for tpu_custom_call.1']
    %8 = vsyncpa [#allocation3], 0
    // Predicated region
    $region2: #{tpu_custom_call.1} parent=1 // pred_check
      _
    $region3: #{tpu_custom_call.1} parent=1 // pred_check_branch
      %10 = sbr.rel (0) target = $region5
    $region4: #{tpu_custom_call.1} parent=1 // pred_region
      _
    $region5: #{tpu_custom_call.1} parent=1 // pred_fallthru
      _
    // Predicated region
    $region6: #{tpu_custom_call.1} parent=1 // pred_check
      _
    $region7: #{tpu_custom_call.1} parent=1 // pred_check_branch
      %12 = sbr.rel (0) target = $region9
    $region8: #{tpu_custom_call.1} parent=1 // pred_region
      _
    $region9: #{tpu_custom_call.1} parent=1 // pred_fallthru
      _
    // Predicated region
    $region10: #{tpu_custom_call.1} parent=1 // pred_check
      _
    $region11: #{tpu_custom_call.1} parent=1 // pred_check_branch
      %14 = sbr.rel (0) target = $region13
    $region12: #{tpu_custom_call.1} parent=1 // pred_region
      _
    $region13: #{tpu_custom_call.1} parent=1 // pred_fallthru
      _
    %v15 = vld [vmem:[%s0] sm:$0xff]
    %v16 = vld [vmem:[%s0 + $0x8] sm:$0xff]
    %v19 = vcombine.high %v15, %v15
    %v20 = vcombine.high %v16, %v16
    %vm23 = vcmask 1043456
    %v24 = vsel %vm23, %v15, 0.0
    %v25 = vsel %vm23, %v19, 0.0
    %v26 = vadd.f32 %v24, %v25
    %27 = vadd.xlane.f32.xlu0 %v26
    %v28 = vpop.xlane.xlu0 %27
    %v29 = vsel %vm23, %v16, 0.0
    %v30 = vsel %vm23, %v20, 0.0
    %v31 = vadd.f32 %v29, %v30
    %32 = vadd.xlane.f32.xlu0 %v31
    %v33 = vpop.xlane.xlu0 %32
    %v34 = vmul.f32 %v28, 0.00390625
    %v35 = vmul.f32 %v33, 0.00390625
    %v36 = vld [vmem:[%s1] sm:$0xf]
    %v37 = vld [vmem:[%s1 + $0x4] sm:$0xf]
    %v38 = vld [vmem:[%s1 + $0x8] sm:$0xf]
    %v39 = vld [vmem:[%s1 + $0xc] sm:$0xf]
    %v40 = vld [vmem:[%s2] sm:$0xf]
    %v41 = vlaneseq
    %v42 = vshrl.u32 %v41, 7
    %v43 = vsub.s32 0, %v42
    %v44 = vrot.slane %v34, %v43
    %v45 = vlaneseq
    %v46 = vshrl.u32 %v45, 7
    %v47 = vsub.s32 0, %v46
    %v48 = vrot.slane %v35, %v47
    %v49 = vmul.f32 %v44, %v36
    %v50 = vmul.f32 %v48, %v36
    %v51 = vadd.f32 %v40, %v49
    %v52 = vadd.f32 %v40, %v50
    %v53 = vlaneseq
    %v54 = vshrl.u32 %v53, 7
    %v55 = vsub.s32 1, %v54
    %v56 = vrot.slane %v34, %v55
    %v57 = vlaneseq
    %v58 = vshrl.u32 %v57, 7
    %v59 = vsub.s32 1, %v58
    %v60 = vrot.slane %v35, %v59
    %v61 = vmul.f32 %v56, %v37
    %v62 = vmul.f32 %v60, %v37
    %v63 = vadd.f32 %v51, %v61
    %v64 = vadd.f32 %v52, %v62
    %v65 = vlaneseq
    %v66 = vshrl.u32 %v65, 7
    %v67 = vsub.s32 2, %v66
    %v68 = vrot.slane %v34, %v67
    %v69 = vlaneseq
    %v70 = vshrl.u32 %v69, 7
    %v71 = vsub.s32 2, %v70
    %v72 = vrot.slane %v35, %v71
    %v73 = vmul.f32 %v68, %v38
    %v74 = vmul.f32 %v72, %v38
    %v75 = vadd.f32 %v63, %v73
    %v76 = vadd.f32 %v64, %v74
    %v77 = vlaneseq
    %v78 = vshrl.u32 %v77, 7
    %v79 = vsub.s32 3, %v78
    %v80 = vrot.slane %v34, %v79
    %v81 = vlaneseq
    %v82 = vshrl.u32 %v81, 7
    %v83 = vsub.s32 3, %v82
    %v84 = vrot.slane %v35, %v83
    %v85 = vmul.f32 %v80, %v39
    %v86 = vmul.f32 %v84, %v39
    %v87 = vadd.f32 %v75, %v85
    %v88 = vadd.f32 %v76, %v86
    %v89 = vsub.f32 0.0, %v87
    %v90 = vsub.f32 0.0, %v88
    %v91 = vmul.f32 %v89, 1.442695
    %v92 = vpow.pop %v91
    %v93 = vmul.f32 %v90, 1.442695
    %v94 = vpow.pop %v93
    %v95 = vadd.f32 %v92, 1.0
    %v96 = vadd.f32 %v94, 1.0
    %v97 = vrcp.pop %v95
    %v98 = vmul.f32 1.0, %v97
    %v99 = vrcp.pop %v96
    %v100 = vmul.f32 1.0, %v99
    %v101 = vadd.f32 %v98, 1.0
    %v102 = vadd.f32 %v100, 1.0
    %104 = vset.pattern.permute.xlu0 0
    %105 = vperm.xlu0 %104, %v101
    %v106 = vpop.permute.xlu0 %105
    %108 = vset.pattern.permute.xlu0 0
    %109 = vperm.xlu0 %108, %v102
    %v110 = vpop.permute.xlu0 %109
    %v112 = vunpack.c.l.s4 839922192
    %v113 = vunpack.c.0.s8 %v112
    %v114 = vlaneseq
    %v115 = vshrl.u32 %v114, 7
    %v116 = vsub.s32 %v113, %v115
    %v117 = vrot.slane %v106, %v116
    %v119 = vunpack.c.l.s4 839922192
    %v120 = vunpack.c.0.s8 %v119
    %v121 = vlaneseq
    %v122 = vshrl.u32 %v121, 7
    %v123 = vsub.s32 %v120, %v122
    %v124 = vrot.slane %v110, %v123
    %v127 = vmul.f32 %v15, %v117
    %v128 = vmul.f32 %v16, %v124
    %129 = vst [vmem:[#allocation2] sm:$0xff] %v127
    %130 = vst [vmem:[#allocation2 + $0x8] sm:$0xff] %v128
    // Predicated region
    $region14: #{tpu_custom_call.1} parent=1 // pred_check
      _
    $region15: #{tpu_custom_call.1} parent=1 // pred_check_branch
      %132 = sbr.rel (0) target = $region17
    $region16: #{tpu_custom_call.1} parent=1 // pred_region
      %s134 = ssub.s32 256, 256
      %135 = vsyncadd [#allocation3], %s134
      %s136 = sshll.u32 [#allocation2], 4
      %s137 = int_to_ptr.vmem [resolvable:$true] %s136
      %142 = dma.vmem_to_hbm [thread:$0]  %s137, 256, %s3, [#allocation3], 128, 128, 8
    $region17: #{tpu_custom_call.1} parent=1 // pred_fallthru
      _
    // Predicated region
    $region18: #{tpu_custom_call.1} parent=1 // pred_check
      _
    $region19: #{tpu_custom_call.1} parent=1 // pred_check_branch
      %144 = sbr.rel (0) target = $region21
    $region20: #{tpu_custom_call.1} parent=1 // pred_region
      %145 = dma.done [#allocation3], 256
    $region21: #{tpu_custom_call.1} parent=1 // pred_fallthru
      _
    %146 = vsyncpa [#allocation3], 1

</llo_original>
